<compile_context>
chip_gen: v6e
topology: v6e:2x2x1
jax: 0.10.0
libtpu: 0.0.40
codegen_flags: <defaults>
</compile_context>

<pallas_src>
import numpy as np
import jax
import jax.numpy as jnp
from jax.experimental import pallas as pl
from jax.experimental.pallas import tpu as pltpu


# ----------------------------- Pallas kernel --------------------------------
def _approach_kernel(x_ref, w1t_ref, b1_ref, w2t_ref, b2_ref, res_ref, vs_ref):
    """NCW-native ApproachNet hot path.

    x_ref   : (B, C_in, TN)   seed features (N on lanes, lane-dense)
    w1t_ref : (C_out, C_in)   conv1 weight, pre-transposed
    b1_ref  : (C_out, 1)      conv1 bias
    w2t_ref : (V, C_in)       conv2 weight, pre-transposed
    b2_ref  : (V, 1)          conv2 bias
    res_ref : (B, C_out, TN)  relu(conv1(x))       (lane-dense output)
    vs_ref  : (B, V, TN)      conv2(res)           (lane-dense output)
    """
    w1t = w1t_ref[...]
    w2t = w2t_ref[...]
    b1 = b1_ref[...]
    b2 = b2_ref[...]

    # B is tiny and static: unrolled per-batch MXU matmuls with N on lanes.
    # TODO(synk): for production C>=128 on v6e/v7x, cast x/w to bf16 for the MXU
    # (keep f32 accumulation); at C=32 it is latency-bound so left in f32.
    for b in range(x_ref.shape[0]):
        x = x_ref[b]                                                   # (C_in, TN)
        h = jnp.dot(w1t, x, preferred_element_type=jnp.float32) + b1   # (C_out, TN)
        res = jnp.maximum(h, 0.0)
        vs = jnp.dot(w2t, res, preferred_element_type=jnp.float32) + b2  # (V, TN)
        res_ref[b] = res.astype(res_ref.dtype)
        vs_ref[b] = vs.astype(vs_ref.dtype)


def _pick_n_tile(n, max_tile=2048):
    """Largest lane-aligned tile over N that divides it (single step at toy N)."""
    if n <= max_tile:
        return n
    t = max_tile
    while t >= 128:
        if n % t == 0:
            return t
        t //= 2
    return n


def _approach_pallas(x_bcn, w1, b1, w2, b2):
    """x_bcn: (B, C, N) float32 (NCW).  w1: (Cin, Cout), w2: (Cin, V)."""
    B, C, N = x_bcn.shape
    V = w2.shape[1]

    # Tiny trace-time weight prep (no hot-path transposes of activations).
    w1t = jnp.transpose(w1)          # (Cout, Cin)
    w2t = jnp.transpose(w2)          # (V, Cin)
    b1_ = b1.reshape(C, 1)
    b2_ = b2.reshape(V, 1)

    tn = _pick_n_tile(N)
    grid = (N // tn,)

    cost = pl.CostEstimate(
        flops=2 * B * N * C * (C + V),
        transcendentals=0,
        bytes_accessed=4 * (2 * B * C * N + B * V * N + C * C + C + C * V + V),
    )

    out_shapes = (
        jax.ShapeDtypeStruct((B, C, N), jnp.float32),   # res_features (NCW)
        jax.ShapeDtypeStruct((B, V, N), jnp.float32),   # view scores, lane-dense
    )
    return pl.pallas_call(
        _approach_kernel,
        out_shape=out_shapes,
        grid=grid,
        in_specs=[
            pl.BlockSpec((B, C, tn), lambda n: (0, 0, n)),
            pl.BlockSpec((C, C), lambda n: (0, 0)),   # constant index_map: weights
            pl.BlockSpec((C, 1), lambda n: (0, 0)),   # stay VMEM-resident across grid
            pl.BlockSpec((V, C), lambda n: (0, 0)),
            pl.BlockSpec((V, 1), lambda n: (0, 0)),
        ],
        out_specs=(
            pl.BlockSpec((B, C, tn), lambda n: (0, 0, n)),
            pl.BlockSpec((B, V, tn), lambda n: (0, 0, n)),
        ),
        compiler_params=pltpu.CompilerParams(
            dimension_semantics=("parallel",)),
        cost_estimate=cost,
    )(x_bcn, w1t, b1_, w2t, b2_)


# ------------------------------ JAX glue -------------------------------------
def generate_grasp_views(num_view, phi=(np.sqrt(5) - 1) / 2):
    """Fibonacci-lattice approach directions on the unit sphere (V, 3)."""
    i = np.arange(num_view, dtype=np.float64)
    zi = (2.0 * i + 1.0) / num_view - 1.0
    xi = np.sqrt(1.0 - zi ** 2) * np.cos(2.0 * i * np.pi * phi)
    yi = np.sqrt(1.0 - zi ** 2) * np.sin(2.0 * i * np.pi * phi)
    return jnp.asarray(np.stack([xi, yi, zi], axis=1), dtype=jnp.float32)


def batch_viewpoint_params_to_matrix(batch_towards, batch_angle):
    axis_x = batch_towards
    zeros = jnp.zeros(axis_x.shape[0], dtype=axis_x.dtype)
    ones = jnp.ones_like(zeros)
    axis_y = jnp.stack([-axis_x[:, 1], axis_x[:, 0], zeros], axis=-1)
    mask_y = jnp.linalg.norm(axis_y, axis=-1) == 0
    axis_y = axis_y.at[:, 1].set(jnp.where(mask_y, 1.0, axis_y[:, 1]))
    axis_x = axis_x / jnp.linalg.norm(axis_x, axis=-1, keepdims=True)
    axis_y = axis_y / jnp.linalg.norm(axis_y, axis=-1, keepdims=True)
    axis_z = jnp.cross(axis_x, axis_y)
    sin = jnp.sin(batch_angle)
    cos = jnp.cos(batch_angle)
    R1 = jnp.stack([ones, zeros, zeros,
                    zeros, cos, -sin,
                    zeros, sin, cos], axis=-1).reshape(-1, 3, 3)
    R2 = jnp.stack([axis_x, axis_y, axis_z], axis=-1)
    return jnp.matmul(R2, R1)


def approach_net_forward(seed_features, params, num_view, is_training=False):
    """seed_features: (B, C, num_seed), matching PyTorch Conv1d NCW input."""
    B, C, N = seed_features.shape

    # NCW-native kernel: no activation transposes, lane-dense outputs.
    res_features, vs_bvn = _approach_pallas(
        seed_features, params["w1"], params["b1"], params["w2"], params["b2"])

    # Tiny (B, V, N) -> (B, N, V) transpose + argmax over V done in XLA (cheap).
    view_score = jnp.transpose(vs_bvn, (0, 2, 1))            # (B, N, V)
    end_points = {"view_score": view_score}

    if is_training:
        # TODO(synk): training branch uses torch.multinomial sampling with a
        # per-batch data-dependent Python branch; no deterministic Pallas
        # equivalent — only the inference branch is implemented.
        raise NotImplementedError("is_training=True branch not translated")

    top_view_inds = jnp.argmax(view_score, axis=-1).astype(jnp.int32)  # (B, N)

    template_views = generate_grasp_views(num_view)          # (V, 3)
    vp_xyz = template_views[top_view_inds]                   # (B, N, 3) gather
    angles = jnp.zeros((B * N,), dtype=vp_xyz.dtype)
    vp_rot = batch_viewpoint_params_to_matrix(-vp_xyz.reshape(-1, 3), angles)
    vp_rot = vp_rot.reshape(B, N, 3, 3)

    end_points["grasp_top_view_xyz"] = vp_xyz
    end_points["grasp_top_view_rot"] = vp_rot
    end_points["grasp_top_view_inds"] = top_view_inds
    return end_points, res_features


# -------------------------------- main ---------------------------------------
if __name__ == "__main__":
    B, C, N, V = 2, 32, 128, 16          # batch, seed_feature_dim, num_seed, num_view

    key = jax.random.PRNGKey(0)
    k1, k2, k3, k4, k5 = jax.random.split(key, 5)
    seed_features = jax.random.normal(k1, (B, C, N), jnp.float32)
    params = {
        "w1": jax.random.normal(k2, (C, C), jnp.float32) * 0.1,   # conv1 weight (Cin, Cout)
        "b1": jax.random.normal(k3, (C,), jnp.float32) * 0.1,     # conv1 bias
        "w2": jax.random.normal(k4, (C, V), jnp.float32) * 0.1,   # conv2 weight (Cin, V)
        "b2": jax.random.normal(k5, (V,), jnp.float32) * 0.1,     # conv2 bias
    }

    end_points, res_features = approach_net_forward(
        seed_features, params, num_view=V, is_training=False)
    jax.block_until_ready((end_points, res_features))

    # Lightweight pure-JAX reference check of the kernel hot path.
    x_nlc = jnp.transpose(seed_features, (0, 2, 1))           # (B, N, C)
    res_ref = jnp.maximum(x_nlc @ params["w1"] + params["b1"], 0.0)
    vs_ref = res_ref @ params["w2"] + params["b2"]
    assert jnp.allclose(jnp.transpose(res_ref, (0, 2, 1)), res_features,
                        atol=1e-4, rtol=1e-4)
    assert jnp.allclose(vs_ref, end_points["view_score"], atol=1e-4, rtol=1e-4)
    assert jnp.array_equal(jnp.argmax(vs_ref, axis=-1).astype(jnp.int32),
                           end_points["grasp_top_view_inds"])
    assert end_points["grasp_top_view_xyz"].shape == (B, N, 3)
    assert end_points["grasp_top_view_rot"].shape == (B, N, 3, 3)

    print("KERNEL_OK")
</pallas_src>

<mosaic_0001>
module attributes {stable_mosaic.version = 11 : i64} {
  func.func @_approach_kernel(%arg0: i32, %arg1: memref<2x32x128xf32, #tpu.memory_space<vmem>>, %arg2: memref<32x32xf32, #tpu.memory_space<vmem>>, %arg3: memref<32x1xf32, #tpu.memory_space<vmem>>, %arg4: memref<16x32xf32, #tpu.memory_space<vmem>>, %arg5: memref<16x1xf32, #tpu.memory_space<vmem>>, %arg6: memref<2x32x128xf32, #tpu.memory_space<vmem>>, %arg7: memref<2x16x128xf32, #tpu.memory_space<vmem>>) attributes {dimension_semantics = [#tpu.dimension_semantics<parallel>], iteration_bounds = array<i64: 1>, scalar_prefetch = 0 : i64, scratch_operands = 0 : i64, tpu.core_type = #tpu.core_type<tc>, window_params = [{transform_indices = @transform_0, window_bounds = array<i64: 2, 32, 128>}, {pipeline_mode = #tpu.pipeline_mode<synchronous>, transform_indices = @transform_1, window_bounds = array<i64: 32, 32>}, {pipeline_mode = #tpu.pipeline_mode<synchronous>, transform_indices = @transform_2, window_bounds = array<i64: 32, 1>}, {pipeline_mode = #tpu.pipeline_mode<synchronous>, transform_indices = @transform_3, window_bounds = array<i64: 16, 32>}, {pipeline_mode = #tpu.pipeline_mode<synchronous>, transform_indices = @transform_4, window_bounds = array<i64: 16, 1>}, {transform_indices = @transform_5, window_bounds = array<i64: 2, 32, 128>}, {transform_indices = @transform_6, window_bounds = array<i64: 2, 16, 128>}]} {
    %c0 = arith.constant 0 : index
    %c0_0 = arith.constant 0 : index
    %0 = vector.load %arg2[%c0, %c0_0] : memref<32x32xf32, #tpu.memory_space<vmem>>, vector<32x32xf32>
    %c0_1 = arith.constant 0 : index
    %c0_2 = arith.constant 0 : index
    %1 = vector.load %arg4[%c0_1, %c0_2] : memref<16x32xf32, #tpu.memory_space<vmem>>, vector<16x32xf32>
    %c0_3 = arith.constant 0 : index
    %c0_4 = arith.constant 0 : index
    %2 = vector.load %arg3[%c0_3, %c0_4] : memref<32x1xf32, #tpu.memory_space<vmem>>, vector<32x1xf32>
    %c0_5 = arith.constant 0 : index
    %c0_6 = arith.constant 0 : index
    %3 = vector.load %arg5[%c0_5, %c0_6] : memref<16x1xf32, #tpu.memory_space<vmem>>, vector<16x1xf32>
    %c0_7 = arith.constant 0 : index
    %c0_8 = arith.constant 0 : index
    %c0_9 = arith.constant 0 : index
    %4 = vector.load %arg1[%c0_7, %c0_8, %c0_9] : memref<2x32x128xf32, #tpu.memory_space<vmem>>, vector<1x32x128xf32>
    %5 = vector.shape_cast %4 : vector<1x32x128xf32> to vector<32x128xf32>
    %cst = arith.constant dense<0.000000e+00> : vector<32x128xf32>
    %6 = tpu.matmul %0, %5, %cst {dimension_numbers = #tpu.dot_dimension_numbers<[1], [0], [0], [1], [0, 0, 1, 1], [], []>} : vector<32x32xf32>, vector<32x128xf32>, vector<32x128xf32> -> vector<32x128xf32>
    %7 = vector.broadcast %2 : vector<32x1xf32> to vector<32x128xf32>
    %8 = arith.addf %6, %7 : vector<32x128xf32>
    %cst_10 = arith.constant 0.000000e+00 : f32
    %9 = vector.broadcast %cst_10 : f32 to vector<32x128xf32>
    %10 = arith.maximumf %8, %9 : vector<32x128xf32>
    %cst_11 = arith.constant dense<0.000000e+00> : vector<16x128xf32>
    %11 = tpu.matmul %1, %10, %cst_11 {dimension_numbers = #tpu.dot_dimension_numbers<[1], [0], [0], [1], [0, 0, 1, 1], [], []>} : vector<16x32xf32>, vector<32x128xf32>, vector<16x128xf32> -> vector<16x128xf32>
    %12 = vector.broadcast %3 : vector<16x1xf32> to vector<16x128xf32>
    %13 = arith.addf %11, %12 : vector<16x128xf32>
    %c0_12 = arith.constant 0 : index
    %c0_13 = arith.constant 0 : index
    %c0_14 = arith.constant 0 : index
    %14 = vector.load %arg6[%c0_12, %c0_13, %c0_14] : memref<2x32x128xf32, #tpu.memory_space<vmem>>, vector<1x32x128xf32>
    %15 = vector.shape_cast %14 : vector<1x32x128xf32> to vector<32x128xf32>
    %16 = vector.shape_cast %10 : vector<32x128xf32> to vector<1x32x128xf32>
    tpu.vector_store %arg6[%c0_12, %c0_13, %c0_14], %16 {strides = array<i32>} : memref<2x32x128xf32, #tpu.memory_space<vmem>>, vector<1x32x128xf32>,
    %c0_15 = arith.constant 0 : index
    %c0_16 = arith.constant 0 : index
    %c0_17 = arith.constant 0 : index
    %17 = vector.load %arg7[%c0_15, %c0_16, %c0_17] : memref<2x16x128xf32, #tpu.memory_space<vmem>>, vector<1x16x128xf32>
    %18 = vector.shape_cast %17 : vector<1x16x128xf32> to vector<16x128xf32>
    %19 = vector.shape_cast %13 : vector<16x128xf32> to vector<1x16x128xf32>
    tpu.vector_store %arg7[%c0_15, %c0_16, %c0_17], %19 {strides = array<i32>} : memref<2x16x128xf32, #tpu.memory_space<vmem>>, vector<1x16x128xf32>,
    %c1 = arith.constant 1 : index
    %c0_18 = arith.constant 0 : index
    %c0_19 = arith.constant 0 : index
    %20 = vector.load %arg1[%c1, %c0_18, %c0_19] : memref<2x32x128xf32, #tpu.memory_space<vmem>>, vector<1x32x128xf32>
    %21 = vector.shape_cast %20 : vector<1x32x128xf32> to vector<32x128xf32>
    %cst_20 = arith.constant dense<0.000000e+00> : vector<32x128xf32>
    %22 = tpu.matmul %0, %21, %cst_20 {dimension_numbers = #tpu.dot_dimension_numbers<[1], [0], [0], [1], [0, 0, 1, 1], [], []>} : vector<32x32xf32>, vector<32x128xf32>, vector<32x128xf32> -> vector<32x128xf32>
    %23 = vector.broadcast %2 : vector<32x1xf32> to vector<32x128xf32>
    %24 = arith.addf %22, %23 : vector<32x128xf32>
    %cst_21 = arith.constant 0.000000e+00 : f32
    %25 = vector.broadcast %cst_21 : f32 to vector<32x128xf32>
    %26 = arith.maximumf %24, %25 : vector<32x128xf32>
    %cst_22 = arith.constant dense<0.000000e+00> : vector<16x128xf32>
    %27 = tpu.matmul %1, %26, %cst_22 {dimension_numbers = #tpu.dot_dimension_numbers<[1], [0], [0], [1], [0, 0, 1, 1], [], []>} : vector<16x32xf32>, vector<32x128xf32>, vector<16x128xf32> -> vector<16x128xf32>
    %28 = vector.broadcast %3 : vector<16x1xf32> to vector<16x128xf32>
    %29 = arith.addf %27, %28 : vector<16x128xf32>
    %c1_23 = arith.constant 1 : index
    %c0_24 = arith.constant 0 : index
    %c0_25 = arith.constant 0 : index
    %30 = vector.load %arg6[%c1_23, %c0_24, %c0_25] : memref<2x32x128xf32, #tpu.memory_space<vmem>>, vector<1x32x128xf32>
    %31 = vector.shape_cast %30 : vector<1x32x128xf32> to vector<32x128xf32>
    %32 = vector.shape_cast %26 : vector<32x128xf32> to vector<1x32x128xf32>
    tpu.vector_store %arg6[%c1_23, %c0_24, %c0_25], %32 {strides = array<i32>} : memref<2x32x128xf32, #tpu.memory_space<vmem>>, vector<1x32x128xf32>,
    %c1_26 = arith.constant 1 : index
    %c0_27 = arith.constant 0 : index
    %c0_28 = arith.constant 0 : index
    %33 = vector.load %arg7[%c1_26, %c0_27, %c0_28] : memref<2x16x128xf32, #tpu.memory_space<vmem>>, vector<1x16x128xf32>
    %34 = vector.shape_cast %33 : vector<1x16x128xf32> to vector<16x128xf32>
    %35 = vector.shape_cast %29 : vector<16x128xf32> to vector<1x16x128xf32>
    tpu.vector_store %arg7[%c1_26, %c0_27, %c0_28], %35 {strides = array<i32>} : memref<2x16x128xf32, #tpu.memory_space<vmem>>, vector<1x16x128xf32>,
    return
  }
  func.func @transform_0(%arg0: i32) -> (i32, i32, i32) {
    %c0_i32 = arith.constant 0 : i32
    %c0_i32_0 = arith.constant 0 : i32
    %c0_i32_1 = arith.constant 0 : i32
    return %c0_i32, %c0_i32_0, %arg0 : i32, i32, i32
  }
  func.func @transform_1(%arg0: i32) -> (i32, i32) {
    %c0_i32 = arith.constant 0 : i32
    %c0_i32_0 = arith.constant 0 : i32
    %c0_i32_1 = arith.constant 0 : i32
    return %c0_i32, %c0_i32_0 : i32, i32
  }
  func.func @transform_2(%arg0: i32) -> (i32, i32) {
    %c0_i32 = arith.constant 0 : i32
    %c0_i32_0 = arith.constant 0 : i32
    %c0_i32_1 = arith.constant 0 : i32
    return %c0_i32, %c0_i32_0 : i32, i32
  }
  func.func @transform_3(%arg0: i32) -> (i32, i32) {
    %c0_i32 = arith.constant 0 : i32
    %c0_i32_0 = arith.constant 0 : i32
    %c0_i32_1 = arith.constant 0 : i32
    return %c0_i32, %c0_i32_0 : i32, i32
  }
  func.func @transform_4(%arg0: i32) -> (i32, i32) {
    %c0_i32 = arith.constant 0 : i32
    %c0_i32_0 = arith.constant 0 : i32
    %c0_i32_1 = arith.constant 0 : i32
    return %c0_i32, %c0_i32_0 : i32, i32
  }
  func.func @transform_5(%arg0: i32) -> (i32, i32, i32) {
    %c0_i32 = arith.constant 0 : i32
    %c0_i32_0 = arith.constant 0 : i32
    %c0_i32_1 = arith.constant 0 : i32
    return %c0_i32, %c0_i32_0, %arg0 : i32, i32, i32
  }
  func.func @transform_6(%arg0: i32) -> (i32, i32, i32) {
    %c0_i32 = arith.constant 0 : i32
    %c0_i32_0 = arith.constant 0 : i32
    %c0_i32_1 = arith.constant 0 : i32
    return %c0_i32, %c0_i32_0, %arg0 : i32, i32, i32
  }
}

</mosaic_0001>

<llo_original>
// kernel: tpu_custom_call.1
$region0: #{tpu_custom_call.1}
  #allocation0 [shape = 'u32[]', space=smem, size = 0x4, offset = 0x4, fixed_abs, tag = 'smem constant byte address 0x4 - core index']
  #allocation1 [shape = 'u32[144,128]{1,0:T(1,128)}', space=vmem, size = 0x12000, scoped, tag = 'internal scratch']
  %s0 = inlined_call_operand.hbm [shape: f32[2,32,128], index: 0, kind: input, shape index: {}]
  %s1 = inlined_call_operand.vmem [shape: f32[32,32], index: 1, kind: input, shape index: {}]
  %s2 = inlined_call_operand.vmem [shape: f32[32,1], index: 2, kind: input, shape index: {}]
  %s3 = inlined_call_operand.vmem [shape: f32[16,32], index: 3, kind: input, shape index: {}]
  %s4 = inlined_call_operand.vmem [shape: f32[16,1], index: 4, kind: input, shape index: {}]
  %s5 = inlined_call_operand.hbm [shape: f32[2,32,128], index: 5, kind: output, shape index: {0}]
  %s6 = inlined_call_operand.hbm [shape: f32[2,16,128], index: 6, kind: output, shape index: {1}]
  %7 = xla_tuple %s5, %s6
  %s8 = sld [smem:[#allocation0]]
  $region42: #{tpu_custom_call.1} parent=0
    _
  %s10 = ssub.s32 1, %s8
  %s11 = scalar_select 0, %s10, %s8
  $region1: #{tpu_custom_call.1} parent=0
    #allocation2 [shape = 'u8[32768]{0}', space=vmem, size = 0x8000, scoped, tag = 'input window, operand 0, single buffered']
    #allocation3 [shape = 's32[1]{0}', space=sflag, size = 0x4, scoped, tag = 'scoped memory for tpu_custom_call.1']
    #allocation4 [shape = 's32[1]{0}', space=sflag, size = 0x4, scoped, tag = 'scoped memory for tpu_custom_call.1']
    #allocation5 [shape = 'u8[32768]{0}', space=vmem, size = 0x8000, scoped, tag = 'output window, operand 0, single buffered']
    #allocation6 [shape = 'u8[16384]{0}', space=vmem, size = 0x4000, scoped, tag = 'output window, operand 1, single buffered']
    #allocation7 [shape = 's32[1]{0}', space=sflag, size = 0x4, scoped, tag = 'scoped memory for tpu_custom_call.1']
    %12 = vsyncpa [#allocation3], 0
    %13 = vsyncpa [#allocation4], 0
    %14 = vsyncpa [#allocation7], 0
    // Predicated region
    $region2: #{tpu_custom_call.1} parent=1 // pred_check
      _
    $region3: #{tpu_custom_call.1} parent=1 // pred_check_branch
      %16 = sbr.rel (0) target = $region5
    $region4: #{tpu_custom_call.1} parent=1 // pred_region
      %s18 = ssub.s32 1024, 1024
      %19 = vsyncadd [#allocation3], %s18
      %s20 = sshll.u32 [#allocation2], 4
      %s21 = int_to_ptr.vmem [resolvable:$true] %s20
      %26 = dma.hbm_to_vmem [thread:$0]  %s0, 1024, %s21, [#allocation3], 128, 128, 8
    $region5: #{tpu_custom_call.1} parent=1 // pred_fallthru
      _
    // Predicated region
    $region6: #{tpu_custom_call.1} parent=1 // pred_check
      _
    $region7: #{tpu_custom_call.1} parent=1 // pred_check_branch
      %28 = sbr.rel (0) target = $region9
    $region8: #{tpu_custom_call.1} parent=1 // pred_region
      _
    $region9: #{tpu_custom_call.1} parent=1 // pred_fallthru
      _
    // Predicated region
    $region10: #{tpu_custom_call.1} parent=1 // pred_check
      _
    $region11: #{tpu_custom_call.1} parent=1 // pred_check_branch
      %30 = sbr.rel (0) target = $region13
    $region12: #{tpu_custom_call.1} parent=1 // pred_region
      _
    $region13: #{tpu_custom_call.1} parent=1 // pred_fallthru
      _
    // Predicated region
    $region14: #{tpu_custom_call.1} parent=1 // pred_check
      _
    $region15: #{tpu_custom_call.1} parent=1 // pred_check_branch
      %32 = sbr.rel (0) target = $region17
    $region16: #{tpu_custom_call.1} parent=1 // pred_region
      _
    $region17: #{tpu_custom_call.1} parent=1 // pred_fallthru
      _
    // Predicated region
    $region18: #{tpu_custom_call.1} parent=1 // pred_check
      _
    $region19: #{tpu_custom_call.1} parent=1 // pred_check_branch
      %34 = sbr.rel (0) target = $region21
    $region20: #{tpu_custom_call.1} parent=1 // pred_region
      _
    $region21: #{tpu_custom_call.1} parent=1 // pred_fallthru
      _
    // Predicated region
    $region22: #{tpu_custom_call.1} parent=1 // pred_check
      _
    $region23: #{tpu_custom_call.1} parent=1 // pred_check_branch
      %36 = sbr.rel (0) target = $region25
    $region24: #{tpu_custom_call.1} parent=1 // pred_region
      %37 = dma.done [#allocation3], 1024
    $region25: #{tpu_custom_call.1} parent=1 // pred_fallthru
      _
    %v38 = vld [vmem:[%s1] sm:$0xff]
    %v39 = vld [vmem:[%s1 + $0x8] sm:$0xff]
    %v40 = vld [vmem:[%s1 + $0x10] sm:$0xff]
    %v41 = vld [vmem:[%s1 + $0x18] sm:$0xff]
    %v42 = vld [vmem:[%s3] sm:$0xff]
    %v43 = vld [vmem:[%s3 + $0x8] sm:$0xff]
    %v44 = vld [vmem:[%s2] sm:$0xff]
    %v45 = vld [vmem:[%s2 + $0x8] sm:$0xff]
    %v46 = vld [vmem:[%s2 + $0x10] sm:$0xff]
    %v47 = vld [vmem:[%s2 + $0x18] sm:$0xff]
    %v48 = vld [vmem:[%s4] sm:$0xff]
    %v49 = vld [vmem:[%s4 + $0x8] sm:$0xff]
    %v50 = vld [vmem:[#allocation2] sm:$0xff]
    %v51 = vld [vmem:[#allocation2 + $0x8] sm:$0xff]
    %v52 = vld [vmem:[#allocation2 + $0x10] sm:$0xff]
    %v53 = vld [vmem:[#allocation2 + $0x18] sm:$0xff]
    %55 = vset.pattern.permute.xlu0 0
    %56 = vperm.xlu0 %55, %v44
    %v57 = vpop.permute.xlu0 %56
    %60 = vset.pattern.permute.xlu0 0
    %61 = vperm.xlu0 %60, %v45
    %v62 = vpop.permute.xlu0 %61
    %65 = vset.pattern.permute.xlu0 0
    %66 = vperm.xlu0 %65, %v46
    %v67 = vpop.permute.xlu0 %66
    %70 = vset.pattern.permute.xlu0 0
    %71 = vperm.xlu0 %70, %v47
    %v72 = vpop.permute.xlu0 %71
    %vm74 = vcmask 261120
    %v76 = vsel %vm74, %v38, 0
    %v79 = vsel %vm74, %v39, 0
    %v82 = vsel %vm74, %v40, 0
    %v85 = vsel %vm74, %v41, 0
    %87 = vmatprep.subr.mxu0 0.0
    %88 = vmatpush1.msra.mxu0 0.0
    %89 = vmatprep.subr.mxu0 0.0
    %90 = vmatpush1.msra.mxu0 0.0
    %91 = vmatprep.subr.mxu0 0.0
    %92 = vmatpush1.msra.mxu0 0.0
    %93 = vmatprep.subr.mxu0 0.0
    %94 = vmatpush1.msra.mxu0 0.0
    %95 = vmatprep.subr.mxu0 0.0
    %96 = vmatpush1.msra.mxu0 0.0
    %97 = vmatprep.subr.mxu0 0.0
    %98 = vmatpush1.msra.mxu0 0.0
    %99 = vmatprep.subr.mxu0 0.0
    %100 = vmatpush1.msra.mxu0 0.0
    %101 = vmatprep.subr.mxu0 0.0
    %102 = vmatpush1.msra.mxu0 0.0
    %103 = vmatprep.subr.mxu0 0.0
    %104 = vmatpush1.msra.mxu0 0.0
    %105 = vmatprep.subr.mxu0 0.0
    %106 = vmatpush1.msra.mxu0 0.0
    %107 = vmatprep.subr.mxu0 0.0
    %108 = vmatpush1.msra.mxu0 0.0
    %109 = vmatprep.subr.mxu0 0.0
    %110 = vmatpush1.msra.mxu0 0.0
    %111 = vmatprep.subr.mxu0 0.0
    %112 = vmatpush1.msra.mxu0 %v53
    %113 = vmatprep.subr.mxu0 0.0
    %114 = vmatpush1.msra.mxu0 %v52
    %115 = vmatprep.subr.mxu0 0.0
    %116 = vmatpush1.msra.mxu0 %v51
    %117 = vmatprep.subr.mxu0 0.0
    %118 = vmatpush1.msra.mxu0 %v50
    %119 = vmatprep.subr.mxu0 0.0
    %120 = vmatpush2.msra.mxu0 0.0
    %121 = vmatprep.subr.mxu0 0.0
    %122 = vmatpush2.msra.mxu0 0.0
    %123 = vmatprep.subr.mxu0 0.0
    %124 = vmatpush2.msra.mxu0 0.0
    %125 = vmatprep.subr.mxu0 0.0
    %126 = vmatpush2.msra.mxu0 0.0
    %127 = vmatprep.subr.mxu0 0.0
    %128 = vmatpush2.msra.mxu0 0.0
    %129 = vmatprep.subr.mxu0 0.0
    %130 = vmatpush2.msra.mxu0 0.0
    %131 = vmatprep.subr.mxu0 0.0
    %132 = vmatpush2.msra.mxu0 0.0
    %133 = vmatprep.subr.mxu0 0.0
    %134 = vmatpush2.msra.mxu0 0.0
    %135 = vmatprep.subr.mxu0 0.0
    %136 = vmatpush2.msra.mxu0 0.0
    %137 = vmatprep.subr.mxu0 0.0
    %138 = vmatpush2.msra.mxu0 0.0
    %139 = vmatprep.subr.mxu0 0.0
    %140 = vmatpush2.msra.mxu0 0.0
    %141 = vmatprep.subr.mxu0 0.0
    %142 = vmatpush2.msra.mxu0 0.0
    %143 = vmatprep.subr.mxu0 0.0
    %144 = vmatpush2.msra.mxu0 0.0
    %145 = vmatprep.subr.mxu0 0.0
    %146 = vmatpush2.msra.mxu0 0.0
    %147 = vmatprep.subr.mxu0 0.0
    %148 = vmatpush2.msra.mxu0 0.0
    %149 = vmatprep.subr.mxu0 0.0
    %150 = vmatpush2.msra.mxu0 0.0
    %151 = vmatprep.mubr.f32.mxu0 0.0
    %152 = vmatmul.mubr.f32.gmra.mxu0 %v76
    %v153 = vpop.f32.mrf.mxu0
    %v154 = vadd.f32 %v57, %v153
    %v155 = vpop.f32.mrf.mxu0
    %156 = vmatprep.mubr.f32.mxu0 0.0
    %157 = vmatmul.mubr.f32.gmra.mxu0 %v79
    %v158 = vpop.f32.mrf.mxu0
    %v159 = vadd.f32 %v62, %v158
    %v160 = vpop.f32.mrf.mxu0
    %161 = vmatprep.mubr.f32.mxu0 0.0
    %162 = vmatmul.mubr.f32.gmra.mxu0 %v82
    %v163 = vpop.f32.mrf.mxu0
    %v164 = vadd.f32 %v67, %v163
    %v165 = vpop.f32.mrf.mxu0
    %166 = vmatprep.mubr.f32.mxu0 0.0
    %167 = vmatmul.mubr.f32.gmra.mxu0 %v85
    %v168 = vpop.f32.mrf.mxu0
    %v169 = vadd.f32 %v72, %v168
    %v170 = vpop.f32.mrf.mxu0
    %171 = vdwg.mxu0
    %v172 = vmax.f32 %v154, 0.0
    %v173 = vmax.f32 %v159, 0.0
    %v174 = vmax.f32 %v164, 0.0
    %v175 = vmax.f32 %v169, 0.0
    %177 = vset.pattern.permute.xlu0 0
    %178 = vperm.xlu0 %177, %v48
    %v179 = vpop.permute.xlu0 %178
    %182 = vset.pattern.permute.xlu0 0
    %183 = vperm.xlu0 %182, %v49
    %v184 = vpop.permute.xlu0 %183
    %v187 = vsel %vm74, %v42, 0
    %v190 = vsel %vm74, %v43, 0
    %192 = vmatprep.subr.mxu0 0.0
    %193 = vmatpush1.msra.mxu0 0.0
    %194 = vmatprep.subr.mxu0 0.0
    %195 = vmatpush1.msra.mxu0 0.0
    %196 = vmatprep.subr.mxu0 0.0
    %197 = vmatpush1.msra.mxu0 0.0
    %198 = vmatprep.subr.mxu0 0.0
    %199 = vmatpush1.msra.mxu0 0.0
    %200 = vmatprep.subr.mxu0 0.0
    %201 = vmatpush1.msra.mxu0 0.0
    %202 = vmatprep.subr.mxu0 0.0
    %203 = vmatpush1.msra.mxu0 0.0
    %204 = vmatprep.subr.mxu0 0.0
    %205 = vmatpush1.msra.mxu0 0.0
    %206 = vmatprep.subr.mxu0 0.0
    %207 = vmatpush1.msra.mxu0 0.0
    %208 = vmatprep.subr.mxu0 0.0
    %209 = vmatpush1.msra.mxu0 0.0
    %210 = vmatprep.subr.mxu0 0.0
    %211 = vmatpush1.msra.mxu0 0.0
    %212 = vmatprep.subr.mxu0 0.0
    %213 = vmatpush1.msra.mxu0 0.0
    %214 = vmatprep.subr.mxu0 0.0
    %215 = vmatpush1.msra.mxu0 0.0
    %216 = vmatprep.subr.mxu0 0.0
    %217 = vmatpush1.msra.mxu0 %v175
    %218 = vmatprep.subr.mxu0 0.0
    %219 = vmatpush1.msra.mxu0 %v174
    %220 = vmatprep.subr.mxu0 0.0
    %221 = vmatpush1.msra.mxu0 %v173
    %222 = vmatprep.subr.mxu0 0.0
    %223 = vmatpush1.msra.mxu0 %v172
    %224 = vmatprep.subr.mxu0 0.0
    %225 = vmatpush2.msra.mxu0 0.0
    %226 = vmatprep.subr.mxu0 0.0
    %227 = vmatpush2.msra.mxu0 0.0
    %228 = vmatprep.subr.mxu0 0.0
    %229 = vmatpush2.msra.mxu0 0.0
    %230 = vmatprep.subr.mxu0 0.0
    %231 = vmatpush2.msra.mxu0 0.0
    %232 = vmatprep.subr.mxu0 0.0
    %233 = vmatpush2.msra.mxu0 0.0
    %234 = vmatprep.subr.mxu0 0.0
    %235 = vmatpush2.msra.mxu0 0.0
    %236 = vmatprep.subr.mxu0 0.0
    %237 = vmatpush2.msra.mxu0 0.0
    %238 = vmatprep.subr.mxu0 0.0
    %239 = vmatpush2.msra.mxu0 0.0
    %240 = vmatprep.subr.mxu0 0.0
    %241 = vmatpush2.msra.mxu0 0.0
    %242 = vmatprep.subr.mxu0 0.0
    %243 = vmatpush2.msra.mxu0 0.0
    %244 = vmatprep.subr.mxu0 0.0
    %245 = vmatpush2.msra.mxu0 0.0
    %246 = vmatprep.subr.mxu0 0.0
    %247 = vmatpush2.msra.mxu0 0.0
    %248 = vmatprep.subr.mxu0 0.0
    %249 = vmatpush2.msra.mxu0 0.0
    %250 = vmatprep.subr.mxu0 0.0
    %251 = vmatpush2.msra.mxu0 0.0
    %252 = vmatprep.subr.mxu0 0.0
    %253 = vmatpush2.msra.mxu0 0.0
    %254 = vmatprep.subr.mxu0 0.0
    %255 = vmatpush2.msra.mxu0 0.0
    %256 = vmatprep.mubr.f32.mxu0 0.0
    %257 = vmatmul.mubr.f32.gmra.mxu0 %v187
    %v258 = vpop.f32.mrf.mxu0
    %v259 = vadd.f32 %v179, %v258
    %v260 = vpop.f32.mrf.mxu0
    %261 = vmatprep.mubr.f32.mxu0 0.0
    %262 = vmatmul.mubr.f32.gmra.mxu0 %v190
    %v263 = vpop.f32.mrf.mxu0
    %v264 = vadd.f32 %v184, %v263
    %v265 = vpop.f32.mrf.mxu0
    %266 = vdwg.mxu0
    %267 = vst [vmem:[#allocation5] sm:$0xff] %v172
    %268 = vst [vmem:[#allocation5 + $0x8] sm:$0xff] %v173
    %269 = vst [vmem:[#allocation5 + $0x10] sm:$0xff] %v174
    %270 = vst [vmem:[#allocation5 + $0x18] sm:$0xff] %v175
    %271 = vst [vmem:[#allocation6] sm:$0xff] %v259
    %272 = vst [vmem:[#allocation6 + $0x8] sm:$0xff] %v264
    %s273 = scalar_lea.vmem [#allocation2], 32
    %v274 = vld [vmem:[%s273] sm:$0xff]
    %v275 = vld [vmem:[%s273 + $0x8] sm:$0xff]
    %v276 = vld [vmem:[%s273 + $0x10] sm:$0xff]
    %v277 = vld [vmem:[%s273 + $0x18] sm:$0xff]
    %278 = vmatprep.subr.mxu0 0.0
    %279 = vmatpush1.msra.mxu0 0.0
    %280 = vmatprep.subr.mxu0 0.0
    %281 = vmatpush1.msra.mxu0 0.0
    %282 = vmatprep.subr.mxu0 0.0
    %283 = vmatpush1.msra.mxu0 0.0
    %284 = vmatprep.subr.mxu0 0.0
    %285 = vmatpush1.msra.mxu0 0.0
    %286 = vmatprep.subr.mxu0 0.0
    %287 = vmatpush1.msra.mxu0 0.0
    %288 = vmatprep.subr.mxu0 0.0
    %289 = vmatpush1.msra.mxu0 0.0
    %290 = vmatprep.subr.mxu0 0.0
    %291 = vmatpush1.msra.mxu0 0.0
    %292 = vmatprep.subr.mxu0 0.0
    %293 = vmatpush1.msra.mxu0 0.0
    %294 = vmatprep.subr.mxu0 0.0
    %295 = vmatpush1.msra.mxu0 0.0
    %296 = vmatprep.subr.mxu0 0.0
    %297 = vmatpush1.msra.mxu0 0.0
    %298 = vmatprep.subr.mxu0 0.0
    %299 = vmatpush1.msra.mxu0 0.0
    %300 = vmatprep.subr.mxu0 0.0
    %301 = vmatpush1.msra.mxu0 0.0
    %302 = vmatprep.subr.mxu0 0.0
    %303 = vmatpush1.msra.mxu0 %v277
    %304 = vmatprep.subr.mxu0 0.0
    %305 = vmatpush1.msra.mxu0 %v276
    %306 = vmatprep.subr.mxu0 0.0
    %307 = vmatpush1.msra.mxu0 %v275
    %308 = vmatprep.subr.mxu0 0.0
    %309 = vmatpush1.msra.mxu0 %v274
    %310 = vmatprep.subr.mxu0 0.0
    %311 = vmatpush2.msra.mxu0 0.0
    %312 = vmatprep.subr.mxu0 0.0
    %313 = vmatpush2.msra.mxu0 0.0
    %314 = vmatprep.subr.mxu0 0.0
    %315 = vmatpush2.msra.mxu0 0.0
    %316 = vmatprep.subr.mxu0 0.0
    %317 = vmatpush2.msra.mxu0 0.0
    %318 = vmatprep.subr.mxu0 0.0
    %319 = vmatpush2.msra.mxu0 0.0
    %320 = vmatprep.subr.mxu0 0.0
    %321 = vmatpush2.msra.mxu0 0.0
    %322 = vmatprep.subr.mxu0 0.0
    %323 = vmatpush2.msra.mxu0 0.0
    %324 = vmatprep.subr.mxu0 0.0
    %325 = vmatpush2.msra.mxu0 0.0
    %326 = vmatprep.subr.mxu0 0.0
    %327 = vmatpush2.msra.mxu0 0.0
    %328 = vmatprep.subr.mxu0 0.0
    %329 = vmatpush2.msra.mxu0 0.0
    %330 = vmatprep.subr.mxu0 0.0
    %331 = vmatpush2.msra.mxu0 0.0
    %332 = vmatprep.subr.mxu0 0.0
    %333 = vmatpush2.msra.mxu0 0.0
    %334 = vmatprep.subr.mxu0 0.0
    %335 = vmatpush2.msra.mxu0 0.0
    %336 = vmatprep.subr.mxu0 0.0
    %337 = vmatpush2.msra.mxu0 0.0
    %338 = vmatprep.subr.mxu0 0.0
    %339 = vmatpush2.msra.mxu0 0.0
    %340 = vmatprep.subr.mxu0 0.0
    %341 = vmatpush2.msra.mxu0 0.0
    %342 = vmatprep.mubr.f32.mxu0 0.0
    %343 = vmatmul.mubr.f32.gmra.mxu0 %v76
    %v344 = vpop.f32.mrf.mxu0
    %v345 = vadd.f32 %v57, %v344
    %v346 = vpop.f32.mrf.mxu0
    %347 = vmatprep.mubr.f32.mxu0 0.0
    %348 = vmatmul.mubr.f32.gmra.mxu0 %v79
    %v349 = vpop.f32.mrf.mxu0
    %v350 = vadd.f32 %v62, %v349
    %v351 = vpop.f32.mrf.mxu0
    %352 = vmatprep.mubr.f32.mxu0 0.0
    %353 = vmatmul.mubr.f32.gmra.mxu0 %v82
    %v354 = vpop.f32.mrf.mxu0
    %v355 = vadd.f32 %v67, %v354
    %v356 = vpop.f32.mrf.mxu0
    %357 = vmatprep.mubr.f32.mxu0 0.0
    %358 = vmatmul.mubr.f32.gmra.mxu0 %v85
    %v359 = vpop.f32.mrf.mxu0
    %v360 = vadd.f32 %v72, %v359
    %v361 = vpop.f32.mrf.mxu0
    %362 = vdwg.mxu0
    %v363 = vmax.f32 %v345, 0.0
    %v364 = vmax.f32 %v350, 0.0
    %v365 = vmax.f32 %v355, 0.0
    %v366 = vmax.f32 %v360, 0.0
    %367 = vmatprep.subr.mxu0 0.0
    %368 = vmatpush1.msra.mxu0 0.0
    %369 = vmatprep.subr.mxu0 0.0
    %370 = vmatpush1.msra.mxu0 0.0
    %371 = vmatprep.subr.mxu0 0.0
    %372 = vmatpush1.msra.mxu0 0.0
    %373 = vmatprep.subr.mxu0 0.0
    %374 = vmatpush1.msra.mxu0 0.0
    %375 = vmatprep.subr.mxu0 0.0
    %376 = vmatpush1.msra.mxu0 0.0
    %377 = vmatprep.subr.mxu0 0.0
    %378 = vmatpush1.msra.mxu0 0.0
    %379 = vmatprep.subr.mxu0 0.0
    %380 = vmatpush1.msra.mxu0 0.0
    %381 = vmatprep.subr.mxu0 0.0
    %382 = vmatpush1.msra.mxu0 0.0
    %383 = vmatprep.subr.mxu0 0.0
    %384 = vmatpush1.msra.mxu0 0.0
    %385 = vmatprep.subr.mxu0 0.0
    %386 = vmatpush1.msra.mxu0 0.0
    %387 = vmatprep.subr.mxu0 0.0
    %388 = vmatpush1.msra.mxu0 0.0
    %389 = vmatprep.subr.mxu0 0.0
    %390 = vmatpush1.msra.mxu0 0.0
    %391 = vmatprep.subr.mxu0 0.0
    %392 = vmatpush1.msra.mxu0 %v366
    %393 = vmatprep.subr.mxu0 0.0
    %394 = vmatpush1.msra.mxu0 %v365
    %395 = vmatprep.subr.mxu0 0.0
    %396 = vmatpush1.msra.mxu0 %v364
    %397 = vmatprep.subr.mxu0 0.0
    %398 = vmatpush1.msra.mxu0 %v363
    %399 = vmatprep.subr.mxu0 0.0
    %400 = vmatpush2.msra.mxu0 0.0
    %401 = vmatprep.subr.mxu0 0.0
    %402 = vmatpush2.msra.mxu0 0.0
    %403 = vmatprep.subr.mxu0 0.0
    %404 = vmatpush2.msra.mxu0 0.0
    %405 = vmatprep.subr.mxu0 0.0
    %406 = vmatpush2.msra.mxu0 0.0
    %407 = vmatprep.subr.mxu0 0.0
    %408 = vmatpush2.msra.mxu0 0.0
    %409 = vmatprep.subr.mxu0 0.0
    %410 = vmatpush2.msra.mxu0 0.0
    %411 = vmatprep.subr.mxu0 0.0
    %412 = vmatpush2.msra.mxu0 0.0
    %413 = vmatprep.subr.mxu0 0.0
    %414 = vmatpush2.msra.mxu0 0.0
    %415 = vmatprep.subr.mxu0 0.0
    %416 = vmatpush2.msra.mxu0 0.0
    %417 = vmatprep.subr.mxu0 0.0
    %418 = vmatpush2.msra.mxu0 0.0
    %419 = vmatprep.subr.mxu0 0.0
    %420 = vmatpush2.msra.mxu0 0.0
    %421 = vmatprep.subr.mxu0 0.0
    %422 = vmatpush2.msra.mxu0 0.0
    %423 = vmatprep.subr.mxu0 0.0
    %424 = vmatpush2.msra.mxu0 0.0
    %425 = vmatprep.subr.mxu0 0.0
    %426 = vmatpush2.msra.mxu0 0.0
    %427 = vmatprep.subr.mxu0 0.0
    %428 = vmatpush2.msra.mxu0 0.0
    %429 = vmatprep.subr.mxu0 0.0
    %430 = vmatpush2.msra.mxu0 0.0
    %431 = vmatprep.mubr.f32.mxu0 0.0
    %432 = vmatmul.mubr.f32.gmra.mxu0 %v187
    %v433 = vpop.f32.mrf.mxu0
    %v434 = vadd.f32 %v179, %v433
    %v435 = vpop.f32.mrf.mxu0
    %436 = vmatprep.mubr.f32.mxu0 0.0
    %437 = vmatmul.mubr.f32.gmra.mxu0 %v190
    %v438 = vpop.f32.mrf.mxu0
    %v439 = vadd.f32 %v184, %v438
    %v440 = vpop.f32.mrf.mxu0
    %441 = vdwg.mxu0
    %s442 = scalar_lea.vmem [#allocation5], 32
    %443 = vst [vmem:[%s442] sm:$0xff] %v363
    %444 = vst [vmem:[%s442 + $0x8] sm:$0xff] %v364
    %445 = vst [vmem:[%s442 + $0x10] sm:$0xff] %v365
    %446 = vst [vmem:[%s442 + $0x18] sm:$0xff] %v366
    %s447 = scalar_lea.vmem [#allocation6], 16
    %448 = vst [vmem:[%s447] sm:$0xff] %v434
    %449 = vst [vmem:[%s447 + $0x8] sm:$0xff] %v439
    // Predicated region
    $region26: #{tpu_custom_call.1} parent=1 // pred_check
      _
    $region27: #{tpu_custom_call.1} parent=1 // pred_check_branch
      %451 = sbr.rel (0) target = $region29
    $region28: #{tpu_custom_call.1} parent=1 // pred_region
      %s453 = ssub.s32 1024, 1024
      %454 = vsyncadd [#allocation4], %s453
      %s455 = sshll.u32 [#allocation5], 4
      %s456 = int_to_ptr.vmem [resolvable:$true] %s455
      %461 = dma.vmem_to_hbm [thread:$0]  %s456, 1024, %s5, [#allocation4], 128, 128, 8
    $region29: #{tpu_custom_call.1} parent=1 // pred_fallthru
      _
    // Predicated region
    $region30: #{tpu_custom_call.1} parent=1 // pred_check
      _
    $region31: #{tpu_custom_call.1} parent=1 // pred_check_branch
      %463 = sbr.rel (0) target = $region33
    $region32: #{tpu_custom_call.1} parent=1 // pred_region
      %s465 = ssub.s32 512, 512
      %466 = vsyncadd [#allocation7], %s465
      %s467 = sshll.u32 [#allocation6], 4
      %s468 = int_to_ptr.vmem [resolvable:$true] %s467
      %473 = dma.vmem_to_hbm [thread:$0]  %s468, 512, %s6, [#allocation7], 128, 128, 8
    $region33: #{tpu_custom_call.1} parent=1 // pred_fallthru
      _
    // Predicated region
    $region34: #{tpu_custom_call.1} parent=1 // pred_check
      _
    $region35: #{tpu_custom_call.1} parent=1 // pred_check_branch
      %475 = sbr.rel (0) target = $region37
    $region36: #{tpu_custom_call.1} parent=1 // pred_region
      %476 = dma.done [#allocation4], 1024
    $region37: #{tpu_custom_call.1} parent=1 // pred_fallthru
      _
    // Predicated region
    $region38: #{tpu_custom_call.1} parent=1 // pred_check
      _
    $region39: #{tpu_custom_call.1} parent=1 // pred_check_branch
      %478 = sbr.rel (0) target = $region41
    $region40: #{tpu_custom_call.1} parent=1 // pred_region
      %479 = dma.done [#allocation7], 512
    $region41: #{tpu_custom_call.1} parent=1 // pred_fallthru
      _
    %480 = vsyncpa [#allocation3], 1
    %481 = vsyncpa [#allocation4], 1
    %482 = vsyncpa [#allocation7], 1

</llo_original>
